<compile_context>
chip_gen: v7x
topology: tpu7x:2x2x1
jax: 0.10.0
libtpu: 0.0.40
codegen_flags: <defaults>
</compile_context>

<pallas_src>
import functools

import jax
import jax.numpy as jnp
from jax import lax
from jax.experimental import pallas as pl
from jax.experimental.pallas import tpu as pltpu

_LANE = 128
_SUBLANE = 8


def _cdiv(a, b):
    return -(-a // b)


def _round_up(n, m):
    return _cdiv(n, m) * m


# ----------------------------- kernels ------------------------------------ #

# Contract the last dim of both operands: (H, D) . (TB, D) -> (H, TB).
_DN_LAST_LAST = (((1,), (1,)), ((), ()))


def _mlp_tail(z1, w2_ref, b2_ref, w3_ref, b3_ref, o_ref, compute_dtype):
    # z1: (H, TB) f32 pre-activation of layer 1 (feature-major, batch on lanes).
    h1 = jnp.tanh(z1.astype(compute_dtype))
    z2 = (
        jnp.dot(w2_ref[...].astype(compute_dtype), h1,
                preferred_element_type=jnp.float32)
        + b2_ref[...]
    )
    h2 = jnp.tanh(z2.astype(compute_dtype))
    # Layer 3 (H -> 1): broadcast-mul + sublane reduce -> lane-dense (1, TB).
    out = (
        jnp.sum(h2.astype(jnp.float32) * w3_ref[...], axis=0, keepdims=True)
        + b3_ref[...]
    )
    o_ref[...] = out.astype(o_ref.dtype)


def _critic_kernel_sa(s_ref, a_ref, w1s_ref, w1a_ref, b1_ref,
                      w2_ref, b2_ref, w3_ref, b3_ref, o_ref,
                      *, compute_dtype):
    # s_ref: (TB, Ds)  a_ref: (TB, Da)          (batch-major, as stored in HBM)
    # w1s:   (H, Ds)   w1a:   (H, Da)   b1: (H, 1)
    # w2:    (H, H)    b2:    (H, 1)
    # w3:    (H, 1)    b3:    (1, 1)    o: (1, TB)  (feature-major, lane-dense)
    s = s_ref[...].astype(jnp.float32)
    a = a_ref[...].astype(jnp.float32)
    # Split-W1 matmuls are bit-identical to cat([s, a], dim=1) @ W1.
    z1 = (
        lax.dot_general(w1s_ref[...], s, _DN_LAST_LAST,
                        preferred_element_type=jnp.float32)
        + lax.dot_general(w1a_ref[...], a, _DN_LAST_LAST,
                          preferred_element_type=jnp.float32)
        + b1_ref[...]
    )
    _mlp_tail(z1, w2_ref, b2_ref, w3_ref, b3_ref, o_ref, compute_dtype)


def _critic_kernel_s(s_ref, w1_ref, b1_ref, w2_ref, b2_ref, w3_ref, b3_ref,
                     o_ref, *, compute_dtype):
    s = s_ref[...].astype(jnp.float32)
    z1 = (
        lax.dot_general(w1_ref[...], s, _DN_LAST_LAST,
                        preferred_element_type=jnp.float32)
        + b1_ref[...]
    )
    _mlp_tail(z1, w2_ref, b2_ref, w3_ref, b3_ref, o_ref, compute_dtype)


# ------------------------ params: init & re-layout ------------------------- #

def init_critic_params(key, hidden_size, state_action=False,
                       state_dim=3, action_dim=1):
    """PyTorch-layout params, Linear default init U(-1/sqrt(fan_in), +)."""
    d_in = state_dim + (action_dim if state_action else 0)
    dims = [(d_in, hidden_size), (hidden_size, hidden_size), (hidden_size, 1)]
    params = {}
    for i, (fi, fo) in enumerate(dims, start=1):
        key, kw, kb = jax.random.split(key, 3)
        bound = 1.0 / (fi ** 0.5)
        params[f"w{i}"] = jax.random.uniform(
            kw, (fi, fo), jnp.float32, minval=-bound, maxval=bound)
        params[f"b{i}"] = jax.random.uniform(
            kb, (1, fo), jnp.float32, minval=-bound, maxval=bound)
    return params


def prepare_critic_params(params, state_dim, action_dim=0, *,
                          state_action=False, layer_norm=False):
    """One-time re-layout of PyTorch-style params into the kernel layout.

    Hoisted out of the per-call path so XLA does not re-transpose / re-slice
    the weights on every forward call.
    """
    if layer_norm:
        # TODO(synk): layer_norm=True variant of the module is not implemented.
        raise NotImplementedError("layer_norm=True is not supported")
    d_in = state_dim + (action_dim if state_action else 0)
    w1 = jnp.asarray(params["w1"])
    assert w1.shape[0] == d_in, (w1.shape, d_in)
    prep = {
        "state_dim": state_dim,
        "action_dim": action_dim if state_action else 0,
        "state_action": state_action,
        "hidden": params["w2"].shape[0],
        "b1_t": jnp.asarray(params["b1"]).T,   # (H, 1)
        "w2_t": jnp.asarray(params["w2"]).T,   # (H, H)
        "b2_t": jnp.asarray(params["b2"]).T,   # (H, 1)
        "w3": jnp.asarray(params["w3"]),       # (H, 1)
        "b3": jnp.asarray(params["b3"]),       # (1, 1)
    }
    if state_action:
        prep["w1s_t"] = w1[:state_dim].T       # (H, Ds)
        prep["w1a_t"] = w1[state_dim:].T       # (H, Da)
    else:
        prep["w1_t"] = w1.T                    # (H, Ds)
    return prep


# ------------------------------ tiling plan -------------------------------- #

def _plan_tiles(batch, max_tile_b, bytes_per_row, vmem_budget=48 << 20):
    """Pick (tile_rows, num_blocks); tile_rows * num_blocks >= batch."""
    if batch <= _LANE:
        # Single small block; output lane dim equals the full array dim.
        return _round_up(batch, _SUBLANE), 1
    # Clamp the tile so VMEM buffers (lane-padded) stay within budget.
    max_rows = max(_LANE, (vmem_budget // bytes_per_row) // _LANE * _LANE)
    max_tile_b = max(_LANE, min(_round_up(max_tile_b, _LANE), max_rows))
    b128 = _round_up(batch, _LANE)
    # Keep >= 2 grid steps so the "parallel" batch axis can split across both
    # TensorCores on v7x (costs one extra ~0.6us step on single-TC v5e/v6e).
    tile = min(max_tile_b, _round_up(_cdiv(b128, 2), _LANE))
    return tile, _cdiv(b128, tile)


# -------------------------------- forward ---------------------------------- #

def critic_forward(prep, state, action=None, *, max_tile_b=4096,
                   compute_dtype=jnp.float32):
    """Pallas implementation of Critic.forward. Returns shape (B,) float32."""
    B = state.shape[0]
    ds = prep["state_dim"]
    da = prep["action_dim"]
    H = prep["hidden"]
    state_action = prep["state_action"]
    assert state.shape[1] == ds, (state.shape, ds)

    n_act_inputs = 2 if state_action else 1
    # Lane-padding-aware VMEM bytes per batch row:
    #   double-buffered (tb, d<=128) input blocks + double-buffered (1, tb)
    #   output blocks + z1/h1/h2 temporaries (with compiler headroom).
    bytes_per_row = 4 * (2 * n_act_inputs * _LANE + 2 * _SUBLANE + 8 * H)
    tb, n_blocks = _plan_tiles(B, max_tile_b, bytes_per_row)
    b_cov = tb * n_blocks                       # rows covered by the grid (>= B)
    vmem_limit = min(bytes_per_row * tb + (4 << 20), 60 << 20)

    def act_spec(f):
        return pl.BlockSpec((tb, f), lambda i: (i, 0))

    def const_spec(shape):
        # Constant index_map: block stays VMEM-resident across grid steps;
        # single-buffer it (never re-fetched, so no pipelining needed).
        return pl.BlockSpec(shape, lambda i: (0, 0),
                            pipeline_mode=pl.Buffered(1))

    common = [
        (prep["b1_t"], const_spec((H, 1))),
        (prep["w2_t"], const_spec((H, H))),
        (prep["b2_t"], const_spec((H, 1))),
        (prep["w3"], const_spec((H, 1))),
        (prep["b3"], const_spec((1, 1))),
    ]

    if state_action:
        assert action is not None and action.shape == (B, da), (
            None if action is None else action.shape, (B, da))
        operands = [
            (state, act_spec(ds)),
            (action, act_spec(da)),
            (prep["w1s_t"], const_spec((H, ds))),
            (prep["w1a_t"], const_spec((H, da))),
        ] + common
        kernel = functools.partial(_critic_kernel_sa, compute_dtype=compute_dtype)
    else:
        operands = [
            (state, act_spec(ds)),
            (prep["w1_t"], const_spec((H, ds))),
        ] + common
        kernel = functools.partial(_critic_kernel_s, compute_dtype=compute_dtype)

    args, in_specs = zip(*operands)

    d_in = ds + da
    cost = pl.CostEstimate(
        flops=2 * b_cov * (d_in * H + H * H + H),
        transcendentals=2 * b_cov * H,
        bytes_accessed=4 * (b_cov * (d_in + 1) + d_in * H + H * H + 3 * H + 1),
    )

    out = pl.pallas_call(
        kernel,
        out_shape=jax.ShapeDtypeStruct((1, b_cov), jnp.float32),
        grid_spec=pltpu.PrefetchScalarGridSpec(
            num_scalar_prefetch=0,
            grid=(n_blocks,),
            in_specs=list(in_specs),
            out_specs=pl.BlockSpec((1, tb), lambda i: (0, i)),
        ),
        compiler_params=pltpu.CompilerParams(
            dimension_semantics=("parallel",),
            vmem_limit_bytes=vmem_limit,
        ),
        cost_estimate=cost,
    )(*args)

    return out[0, :B]


# ------------------------------- reference --------------------------------- #

def _reference_forward(params, state, action=None, *, state_action=False):
    x = jnp.concatenate([state, action], axis=1) if state_action else state
    x = x.astype(jnp.float32)
    h1 = jnp.tanh(x @ params["w1"] + params["b1"])
    h2 = jnp.tanh(h1 @ params["w2"] + params["b2"])
    return jnp.squeeze(h2 @ params["w3"] + params["b3"], axis=1)


# --------------------------------- main ------------------------------------ #

if __name__ == "__main__":
    key = jax.random.PRNGKey(0)
    hidden_size = 32

    (k_params_sa, k_params_s, k_state, k_action,
     k_state_l, k_action_l) = jax.random.split(key, 6)

    # --- small batch, both paths (module-scale check) ----------------------
    batch = 8
    state = jax.random.normal(k_state, (batch, 3), jnp.float32)
    action = jax.random.normal(k_action, (batch, 1), jnp.float32)

    params_sa = init_critic_params(k_params_sa, hidden_size, state_action=True)
    prep_sa = prepare_critic_params(params_sa, state_dim=3, action_dim=1,
                                    state_action=True)
    val_sa = jax.block_until_ready(critic_forward(prep_sa, state, action))
    ref_sa = _reference_forward(params_sa, state, action, state_action=True)
    assert val_sa.shape == (batch,), val_sa.shape
    assert jnp.allclose(val_sa, ref_sa, atol=1e-5, rtol=1e-5), (val_sa, ref_sa)

    params_s = init_critic_params(k_params_s, hidden_size, state_action=False)
    prep_s = prepare_critic_params(params_s, state_dim=3, state_action=False)
    val_s = jax.block_until_ready(critic_forward(prep_s, state))
    ref_s = _reference_forward(params_s, state, state_action=False)
    assert val_s.shape == (batch,), val_s.shape
    assert jnp.allclose(val_s, ref_s, atol=1e-5, rtol=1e-5), (val_s, ref_s)

    # --- larger batch: exercises the multi-block (>=2 "parallel" steps) path
    big = 1024
    state_l = jax.random.normal(k_state_l, (big, 3), jnp.float32)
    action_l = jax.random.normal(k_action_l, (big, 1), jnp.float32)
    val_big = jax.block_until_ready(
        critic_forward(prep_sa, state_l, action_l, max_tile_b=512))
    ref_big = _reference_forward(params_sa, state_l, action_l, state_action=True)
    assert val_big.shape == (big,), val_big.shape
    assert jnp.allclose(val_big, ref_big, atol=1e-5, rtol=1e-5), "big-batch mismatch"

    # --- bf16 compute lever (v6e/v7x EUP/MXU): looser tolerance -------------
    val_bf16 = jax.block_until_ready(
        critic_forward(prep_sa, state_l, action_l, compute_dtype=jnp.bfloat16))
    assert val_bf16.shape == (big,), val_bf16.shape
    assert jnp.allclose(val_bf16, ref_big, atol=1e-1, rtol=1e-1), "bf16 mismatch"

    print("KERNEL_OK")
</pallas_src>

<mosaic_0001>
module attributes {stable_mosaic.version = 11 : i64} {
  func.func @_critic_kernel_sa(%arg0: i32, %arg1: memref<8x3xf32, #tpu.memory_space<vmem>>, %arg2: memref<8x1xf32, #tpu.memory_space<vmem>>, %arg3: memref<32x3xf32, #tpu.memory_space<vmem>>, %arg4: memref<32x1xf32, #tpu.memory_space<vmem>>, %arg5: memref<32x1xf32, #tpu.memory_space<vmem>>, %arg6: memref<32x32xf32, #tpu.memory_space<vmem>>, %arg7: memref<32x1xf32, #tpu.memory_space<vmem>>, %arg8: memref<32x1xf32, #tpu.memory_space<vmem>>, %arg9: memref<1x1xf32, #tpu.memory_space<vmem>>, %arg10: memref<1x8xf32, #tpu.memory_space<vmem>>) attributes {dimension_semantics = [#tpu.dimension_semantics<parallel>], iteration_bounds = array<i64: 1>, scalar_prefetch = 0 : i64, scratch_operands = 0 : i64, tpu.core_type = #tpu.core_type<tc>, window_params = [{transform_indices = @transform_0, window_bounds = array<i64: 8, 3>}, {transform_indices = @transform_1, window_bounds = array<i64: 8, 1>}, {pipeline_mode = #tpu.pipeline_mode<synchronous>, transform_indices = @transform_2, window_bounds = array<i64: 32, 3>}, {pipeline_mode = #tpu.pipeline_mode<synchronous>, transform_indices = @transform_3, window_bounds = array<i64: 32, 1>}, {pipeline_mode = #tpu.pipeline_mode<synchronous>, transform_indices = @transform_4, window_bounds = array<i64: 32, 1>}, {pipeline_mode = #tpu.pipeline_mode<synchronous>, transform_indices = @transform_5, window_bounds = array<i64: 32, 32>}, {pipeline_mode = #tpu.pipeline_mode<synchronous>, transform_indices = @transform_6, window_bounds = array<i64: 32, 1>}, {pipeline_mode = #tpu.pipeline_mode<synchronous>, transform_indices = @transform_7, window_bounds = array<i64: 32, 1>}, {pipeline_mode = #tpu.pipeline_mode<synchronous>, transform_indices = @transform_8, window_bounds = array<i64: 1, 1>}, {transform_indices = @transform_9, window_bounds = array<i64: 1, 8>}]} {
    %c0 = arith.constant 0 : index
    %c0_0 = arith.constant 0 : index
    %0 = vector.load %arg1[%c0, %c0_0] : memref<8x3xf32, #tpu.memory_space<vmem>>, vector<8x3xf32>
    %c0_1 = arith.constant 0 : index
    %c0_2 = arith.constant 0 : index
    %1 = vector.load %arg2[%c0_1, %c0_2] : memref<8x1xf32, #tpu.memory_space<vmem>>, vector<8x1xf32>
    %c0_3 = arith.constant 0 : index
    %c0_4 = arith.constant 0 : index
    %2 = vector.load %arg3[%c0_3, %c0_4] : memref<32x3xf32, #tpu.memory_space<vmem>>, vector<32x3xf32>
    %cst = arith.constant dense<0.000000e+00> : vector<32x8xf32>
    %3 = tpu.matmul %2, %0, %cst {dimension_numbers = #tpu.dot_dimension_numbers<[1], [1], [0], [0], [0, 0, 1, 0], [], []>} : vector<32x3xf32>, vector<8x3xf32>, vector<32x8xf32> -> vector<32x8xf32>
    %c0_5 = arith.constant 0 : index
    %c0_6 = arith.constant 0 : index
    %4 = vector.load %arg4[%c0_5, %c0_6] : memref<32x1xf32, #tpu.memory_space<vmem>>, vector<32x1xf32>
    %cst_7 = arith.constant dense<0.000000e+00> : vector<32x8xf32>
    %5 = tpu.matmul %4, %1, %cst_7 {dimension_numbers = #tpu.dot_dimension_numbers<[1], [1], [0], [0], [0, 0, 1, 0], [], []>} : vector<32x1xf32>, vector<8x1xf32>, vector<32x8xf32> -> vector<32x8xf32>
    %6 = arith.addf %3, %5 : vector<32x8xf32>
    %c0_8 = arith.constant 0 : index
    %c0_9 = arith.constant 0 : index
    %7 = vector.load %arg5[%c0_8, %c0_9] : memref<32x1xf32, #tpu.memory_space<vmem>>, vector<32x1xf32>
    %8 = vector.broadcast %7 : vector<32x1xf32> to vector<32x8xf32>
    %9 = arith.addf %6, %8 : vector<32x8xf32>
    %10 = math.tanh %9 : vector<32x8xf32>
    %c0_10 = arith.constant 0 : index
    %c0_11 = arith.constant 0 : index
    %11 = vector.load %arg6[%c0_10, %c0_11] : memref<32x32xf32, #tpu.memory_space<vmem>>, vector<32x32xf32>
    %cst_12 = arith.constant dense<0.000000e+00> : vector<32x8xf32>
    %12 = tpu.matmul %11, %10, %cst_12 {dimension_numbers = #tpu.dot_dimension_numbers<[1], [0], [0], [1], [0, 0, 1, 1], [], []>} : vector<32x32xf32>, vector<32x8xf32>, vector<32x8xf32> -> vector<32x8xf32>
    %c0_13 = arith.constant 0 : index
    %c0_14 = arith.constant 0 : index
    %13 = vector.load %arg7[%c0_13, %c0_14] : memref<32x1xf32, #tpu.memory_space<vmem>>, vector<32x1xf32>
    %14 = vector.broadcast %13 : vector<32x1xf32> to vector<32x8xf32>
    %15 = arith.addf %12, %14 : vector<32x8xf32>
    %16 = math.tanh %15 : vector<32x8xf32>
    %c0_15 = arith.constant 0 : index
    %c0_16 = arith.constant 0 : index
    %17 = vector.load %arg8[%c0_15, %c0_16] : memref<32x1xf32, #tpu.memory_space<vmem>>, vector<32x1xf32>
    %18 = vector.broadcast %17 : vector<32x1xf32> to vector<32x8xf32>
    %19 = arith.mulf %16, %18 : vector<32x8xf32>
    %cst_17 = arith.constant dense<0.000000e+00> : vector<8xf32>
    %20 = vector.multi_reduction <add>, %19, %cst_17 [0] : vector<32x8xf32> to vector<8xf32>
    %21 = vector.shape_cast %20 : vector<8xf32> to vector<1x8xf32>
    %c0_18 = arith.constant 0 : index
    %c0_19 = arith.constant 0 : index
    %22 = vector.load %arg9[%c0_18, %c0_19] : memref<1x1xf32, #tpu.memory_space<vmem>>, vector<1x1xf32>
    %23 = vector.broadcast %22 : vector<1x1xf32> to vector<1x8xf32>
    %24 = arith.addf %21, %23 : vector<1x8xf32>
    %c0_20 = arith.constant 0 : index
    %c0_21 = arith.constant 0 : index
    %25 = vector.load %arg10[%c0_20, %c0_21] : memref<1x8xf32, #tpu.memory_space<vmem>>, vector<1x8xf32>
    tpu.vector_store %arg10[%c0_20, %c0_21], %24 {strides = array<i32>} : memref<1x8xf32, #tpu.memory_space<vmem>>, vector<1x8xf32>,
    return
  }
  func.func @transform_0(%arg0: i32) -> (i32, i32) {
    %c0_i32 = arith.constant 0 : i32
    %c0_i32_0 = arith.constant 0 : i32
    return %arg0, %c0_i32 : i32, i32
  }
  func.func @transform_1(%arg0: i32) -> (i32, i32) {
    %c0_i32 = arith.constant 0 : i32
    %c0_i32_0 = arith.constant 0 : i32
    return %arg0, %c0_i32 : i32, i32
  }
  func.func @transform_2(%arg0: i32) -> (i32, i32) {
    %c0_i32 = arith.constant 0 : i32
    %c0_i32_0 = arith.constant 0 : i32
    %c0_i32_1 = arith.constant 0 : i32
    return %c0_i32, %c0_i32_0 : i32, i32
  }
  func.func @transform_3(%arg0: i32) -> (i32, i32) {
    %c0_i32 = arith.constant 0 : i32
    %c0_i32_0 = arith.constant 0 : i32
    %c0_i32_1 = arith.constant 0 : i32
    return %c0_i32, %c0_i32_0 : i32, i32
  }
  func.func @transform_4(%arg0: i32) -> (i32, i32) {
    %c0_i32 = arith.constant 0 : i32
    %c0_i32_0 = arith.constant 0 : i32
    %c0_i32_1 = arith.constant 0 : i32
    return %c0_i32, %c0_i32_0 : i32, i32
  }
  func.func @transform_5(%arg0: i32) -> (i32, i32) {
    %c0_i32 = arith.constant 0 : i32
    %c0_i32_0 = arith.constant 0 : i32
    %c0_i32_1 = arith.constant 0 : i32
    return %c0_i32, %c0_i32_0 : i32, i32
  }
  func.func @transform_6(%arg0: i32) -> (i32, i32) {
    %c0_i32 = arith.constant 0 : i32
    %c0_i32_0 = arith.constant 0 : i32
    %c0_i32_1 = arith.constant 0 : i32
    return %c0_i32, %c0_i32_0 : i32, i32
  }
  func.func @transform_7(%arg0: i32) -> (i32, i32) {
    %c0_i32 = arith.constant 0 : i32
    %c0_i32_0 = arith.constant 0 : i32
    %c0_i32_1 = arith.constant 0 : i32
    return %c0_i32, %c0_i32_0 : i32, i32
  }
  func.func @transform_8(%arg0: i32) -> (i32, i32) {
    %c0_i32 = arith.constant 0 : i32
    %c0_i32_0 = arith.constant 0 : i32
    %c0_i32_1 = arith.constant 0 : i32
    return %c0_i32, %c0_i32_0 : i32, i32
  }
  func.func @transform_9(%arg0: i32) -> (i32, i32) {
    %c0_i32 = arith.constant 0 : i32
    %c0_i32_0 = arith.constant 0 : i32
    return %c0_i32, %arg0 : i32, i32
  }
}

</mosaic_0001>

<llo_original>
// kernel: tpu_custom_call.1
$region0: #{tpu_custom_call.1}
  #allocation0 [shape = 'u32[]', space=smem, size = 0x4, offset = 0x4, fixed_abs, tag = 'smem constant byte address 0x4 - core index']
  #allocation1 [shape = 'u32[144,128]{1,0:T(1,128)}', space=vmem, size = 0x12000, scoped, tag = 'internal scratch']
  #allocation2 [shape = 'f32[1,1]{1,0:T(1,128)S(1)}', space=vmem, size = 0x200, scoped, tag = 'scoped memory for tpu_custom_call.1']
  %s0 = inlined_call_operand.vmem [shape: f32[8,3], index: 0, kind: input, shape index: {}]
  %s1 = inlined_call_operand.vmem [shape: f32[8,1], index: 1, kind: input, shape index: {}]
  %s2 = inlined_call_operand.vmem [shape: f32[32,3], index: 2, kind: input, shape index: {}]
  %s3 = inlined_call_operand.vmem [shape: f32[32,1], index: 3, kind: input, shape index: {}]
  %s4 = inlined_call_operand.vmem [shape: f32[32,1], index: 4, kind: input, shape index: {}]
  %s5 = inlined_call_operand.vmem [shape: f32[32,32], index: 5, kind: input, shape index: {}]
  %s6 = inlined_call_operand.vmem [shape: f32[32,1], index: 6, kind: input, shape index: {}]
  %s7 = inlined_call_operand.vmem [shape: f32[32,1], index: 7, kind: input, shape index: {}]
  %s8 = inlined_call_operand.<no memory space> [shape: f32[1,1], index: 8, kind: input, shape index: {}]
  %s9 = inlined_call_operand.hbm [shape: f32[1,8], index: 9, kind: output, shape index: {}]
  %s10 = sld [smem:[#allocation0]]
  $region46: #{tpu_custom_call.1} parent=0
    _
  %s12 = ssub.s32 1, %s10
  %s13 = scalar_select 0, %s12, %s10
  %v14 = vstv %s8
  %15 = vst [vmem:[#allocation2] sm:$0x1] %v14
  $region1: #{tpu_custom_call.1} parent=0
    #allocation3 [shape = 'u8[512]{0}', space=vmem, size = 0x400, scoped, tag = 'output window, operand 0, single buffered']
    #allocation4 [shape = 's32[1]{0}', space=sflag, size = 0x4, scoped, tag = 'scoped memory for tpu_custom_call.1']
    %16 = vsyncpa [#allocation4], 0
    // Predicated region
    $region2: #{tpu_custom_call.1} parent=1 // pred_check
      _
    $region3: #{tpu_custom_call.1} parent=1 // pred_check_branch
      %18 = sbr.rel (0) target = $region5
    $region4: #{tpu_custom_call.1} parent=1 // pred_region
      _
    $region5: #{tpu_custom_call.1} parent=1 // pred_fallthru
      _
    // Predicated region
    $region6: #{tpu_custom_call.1} parent=1 // pred_check
      _
    $region7: #{tpu_custom_call.1} parent=1 // pred_check_branch
      %20 = sbr.rel (0) target = $region9
    $region8: #{tpu_custom_call.1} parent=1 // pred_region
      _
    $region9: #{tpu_custom_call.1} parent=1 // pred_fallthru
      _
    // Predicated region
    $region10: #{tpu_custom_call.1} parent=1 // pred_check
      _
    $region11: #{tpu_custom_call.1} parent=1 // pred_check_branch
      %22 = sbr.rel (0) target = $region13
    $region12: #{tpu_custom_call.1} parent=1 // pred_region
      _
    $region13: #{tpu_custom_call.1} parent=1 // pred_fallthru
      _
    // Predicated region
    $region14: #{tpu_custom_call.1} parent=1 // pred_check
      _
    $region15: #{tpu_custom_call.1} parent=1 // pred_check_branch
      %24 = sbr.rel (0) target = $region17
    $region16: #{tpu_custom_call.1} parent=1 // pred_region
      _
    $region17: #{tpu_custom_call.1} parent=1 // pred_fallthru
      _
    // Predicated region
    $region18: #{tpu_custom_call.1} parent=1 // pred_check
      _
    $region19: #{tpu_custom_call.1} parent=1 // pred_check_branch
      %26 = sbr.rel (0) target = $region21
    $region20: #{tpu_custom_call.1} parent=1 // pred_region
      _
    $region21: #{tpu_custom_call.1} parent=1 // pred_fallthru
      _
    // Predicated region
    $region22: #{tpu_custom_call.1} parent=1 // pred_check
      _
    $region23: #{tpu_custom_call.1} parent=1 // pred_check_branch
      %28 = sbr.rel (0) target = $region25
    $region24: #{tpu_custom_call.1} parent=1 // pred_region
      _
    $region25: #{tpu_custom_call.1} parent=1 // pred_fallthru
      _
    // Predicated region
    $region26: #{tpu_custom_call.1} parent=1 // pred_check
      _
    $region27: #{tpu_custom_call.1} parent=1 // pred_check_branch
      %30 = sbr.rel (0) target = $region29
    $region28: #{tpu_custom_call.1} parent=1 // pred_region
      _
    $region29: #{tpu_custom_call.1} parent=1 // pred_fallthru
      _
    // Predicated region
    $region30: #{tpu_custom_call.1} parent=1 // pred_check
      _
    $region31: #{tpu_custom_call.1} parent=1 // pred_check_branch
      %32 = sbr.rel (0) target = $region33
    $region32: #{tpu_custom_call.1} parent=1 // pred_region
      _
    $region33: #{tpu_custom_call.1} parent=1 // pred_fallthru
      _
    // Predicated region
    $region34: #{tpu_custom_call.1} parent=1 // pred_check
      _
    $region35: #{tpu_custom_call.1} parent=1 // pred_check_branch
      %34 = sbr.rel (0) target = $region37
    $region36: #{tpu_custom_call.1} parent=1 // pred_region
      _
    $region37: #{tpu_custom_call.1} parent=1 // pred_fallthru
      _
    %v35 = vld [vmem:[%s0] sm:$0xff]
    %v36 = vld [vmem:[%s1] sm:$0xff]
    %v37 = vld [vmem:[%s2] sm:$0xff]
    %v38 = vld [vmem:[%s2 + $0x8] sm:$0xff]
    %v39 = vld [vmem:[%s2 + $0x10] sm:$0xff]
    %v40 = vld [vmem:[%s2 + $0x18] sm:$0xff]
    %v41 = vld [vmem:[%s3] sm:$0xff]
    %v42 = vld [vmem:[%s3 + $0x8] sm:$0xff]
    %v43 = vld [vmem:[%s3 + $0x10] sm:$0xff]
    %v44 = vld [vmem:[%s3 + $0x18] sm:$0xff]
    %vm45 = vcmask 7168
    %v47 = vsel %vm45, %v41, 0
    %v50 = vsel %vm45, %v42, 0
    %v53 = vsel %vm45, %v43, 0
    %v56 = vsel %vm45, %v44, 0
    %v59 = vsel %vm45, %v36, 0
    %61 = vmatprep.subr.mxu0 0.0
    %62 = vmatpush1.xpose.msra.mxu0 %v59
    %63 = vmatprep.subr.mxu0 0.0
    %64 = vmatpush1.xpose.msra.mxu0 0.0
    %65 = vmatprep.subr.mxu0 0.0
    %66 = vmatpush1.xpose.msra.mxu0 0.0
    %67 = vmatprep.subr.mxu0 0.0
    %68 = vmatpush1.xpose.msra.mxu0 0.0
    %69 = vmatprep.subr.mxu0 0.0
    %70 = vmatpush1.xpose.msra.mxu0 0.0
    %71 = vmatprep.subr.mxu0 0.0
    %72 = vmatpush1.xpose.msra.mxu0 0.0
    %73 = vmatprep.subr.mxu0 0.0
    %74 = vmatpush1.xpose.msra.mxu0 0.0
    %75 = vmatprep.subr.mxu0 0.0
    %76 = vmatpush1.xpose.msra.mxu0 0.0
    %77 = vmatprep.subr.mxu0 0.0
    %78 = vmatpush1.xpose.msra.mxu0 0.0
    %79 = vmatprep.subr.mxu0 0.0
    %80 = vmatpush1.xpose.msra.mxu0 0.0
    %81 = vmatprep.subr.mxu0 0.0
    %82 = vmatpush1.xpose.msra.mxu0 0.0
    %83 = vmatprep.subr.mxu0 0.0
    %84 = vmatpush1.xpose.msra.mxu0 0.0
    %85 = vmatprep.subr.mxu0 0.0
    %86 = vmatpush1.xpose.msra.mxu0 0.0
    %87 = vmatprep.subr.mxu0 0.0
    %88 = vmatpush1.xpose.msra.mxu0 0.0
    %89 = vmatprep.subr.mxu0 0.0
    %90 = vmatpush1.xpose.msra.mxu0 0.0
    %91 = vmatprep.subr.mxu0 0.0
    %92 = vmatpush1.xpose.msra.mxu0 0.0
    %93 = vmatprep.subr.mxu0 0.0
    %94 = vmatpush1.xpose.msra.mxu0 0.0
    %95 = vmatprep.subr.mxu0 0.0
    %96 = vmatpush1.xpose.msra.mxu0 0.0
    %97 = vmatprep.subr.mxu0 0.0
    %98 = vmatpush1.xpose.msra.mxu0 0.0
    %99 = vmatprep.subr.mxu0 0.0
    %100 = vmatpush1.xpose.msra.mxu0 0.0
    %101 = vmatprep.subr.mxu0 0.0
    %102 = vmatpush1.xpose.msra.mxu0 0.0
    %103 = vmatprep.subr.mxu0 0.0
    %104 = vmatpush1.xpose.msra.mxu0 0.0
    %105 = vmatprep.subr.mxu0 0.0
    %106 = vmatpush1.xpose.msra.mxu0 0.0
    %107 = vmatprep.subr.mxu0 0.0
    %108 = vmatpush1.xpose.msra.mxu0 0.0
    %109 = vmatprep.subr.mxu0 0.0
    %110 = vmatpush1.xpose.msra.mxu0 0.0
    %111 = vmatprep.subr.mxu0 0.0
    %112 = vmatpush1.xpose.msra.mxu0 0.0
    %113 = vmatprep.subr.mxu0 0.0
    %114 = vmatpush1.xpose.msra.mxu0 0.0
    %115 = vmatprep.subr.mxu0 0.0
    %116 = vmatpush1.xpose.msra.mxu0 0.0
    %117 = vmatprep.subr.mxu0 0.0
    %118 = vmatpush1.xpose.msra.mxu0 0.0
    %119 = vmatprep.subr.mxu0 0.0
    %120 = vmatpush1.xpose.msra.mxu0 0.0
    %121 = vmatprep.subr.mxu0 0.0
    %122 = vmatpush1.xpose.msra.mxu0 0.0
    %123 = vmatprep.subr.mxu0 0.0
    %124 = vmatpush1.xpose.msra.mxu0 0.0
    %125 = vmatprep.mubr.f32.mxu0 0.0
    %126 = vmatmul.mubr.f32.gmra.mrb[0].mxu0 %v47
    %v127 = vpop.f32.mrb[0].mxu0
    %v128 = vadd.f32 0.0, %v127
    %v129 = vpop.f32.mrb[0].mxu0
    %130 = vmatprep.mubr.f32.mxu0 0.0
    %131 = vmatmul.mubr.f32.gmra.mrb[0].mxu0 %v50
    %v132 = vpop.f32.mrb[0].mxu0
    %v133 = vadd.f32 0.0, %v132
    %v134 = vpop.f32.mrb[0].mxu0
    %135 = vmatprep.mubr.f32.mxu0 0.0
    %136 = vmatmul.mubr.f32.gmra.mrb[0].mxu0 %v53
    %v137 = vpop.f32.mrb[0].mxu0
    %v138 = vadd.f32 0.0, %v137
    %v139 = vpop.f32.mrb[0].mxu0
    %140 = vmatprep.mubr.f32.mxu0 0.0
    %141 = vmatmul.mubr.f32.gmra.mrb[0].mxu0 %v56
    %v142 = vpop.f32.mrb[0].mxu0
    %v143 = vadd.f32 0.0, %v142
    %v144 = vpop.f32.mrb[0].mxu0
    %145 = vdwg.mxu0
    %vm146 = vcmask 23552
    %v148 = vsel %vm146, %v37, 0
    %v151 = vsel %vm146, %v38, 0
    %v154 = vsel %vm146, %v39, 0
    %v157 = vsel %vm146, %v40, 0
    %v160 = vsel %vm146, %v35, 0
    %162 = vmatprep.subr.mxu0 0.0
    %163 = vmatpush1.xpose.msra.mxu0 %v160
    %164 = vmatprep.subr.mxu0 0.0
    %165 = vmatpush1.xpose.msra.mxu0 0.0
    %166 = vmatprep.subr.mxu0 0.0
    %167 = vmatpush1.xpose.msra.mxu0 0.0
    %168 = vmatprep.subr.mxu0 0.0
    %169 = vmatpush1.xpose.msra.mxu0 0.0
    %170 = vmatprep.subr.mxu0 0.0
    %171 = vmatpush1.xpose.msra.mxu0 0.0
    %172 = vmatprep.subr.mxu0 0.0
    %173 = vmatpush1.xpose.msra.mxu0 0.0
    %174 = vmatprep.subr.mxu0 0.0
    %175 = vmatpush1.xpose.msra.mxu0 0.0
    %176 = vmatprep.subr.mxu0 0.0
    %177 = vmatpush1.xpose.msra.mxu0 0.0
    %178 = vmatprep.subr.mxu0 0.0
    %179 = vmatpush1.xpose.msra.mxu0 0.0
    %180 = vmatprep.subr.mxu0 0.0
    %181 = vmatpush1.xpose.msra.mxu0 0.0
    %182 = vmatprep.subr.mxu0 0.0
    %183 = vmatpush1.xpose.msra.mxu0 0.0
    %184 = vmatprep.subr.mxu0 0.0
    %185 = vmatpush1.xpose.msra.mxu0 0.0
    %186 = vmatprep.subr.mxu0 0.0
    %187 = vmatpush1.xpose.msra.mxu0 0.0
    %188 = vmatprep.subr.mxu0 0.0
    %189 = vmatpush1.xpose.msra.mxu0 0.0
    %190 = vmatprep.subr.mxu0 0.0
    %191 = vmatpush1.xpose.msra.mxu0 0.0
    %192 = vmatprep.subr.mxu0 0.0
    %193 = vmatpush1.xpose.msra.mxu0 0.0
    %194 = vmatprep.subr.mxu0 0.0
    %195 = vmatpush1.xpose.msra.mxu0 0.0
    %196 = vmatprep.subr.mxu0 0.0
    %197 = vmatpush1.xpose.msra.mxu0 0.0
    %198 = vmatprep.subr.mxu0 0.0
    %199 = vmatpush1.xpose.msra.mxu0 0.0
    %200 = vmatprep.subr.mxu0 0.0
    %201 = vmatpush1.xpose.msra.mxu0 0.0
    %202 = vmatprep.subr.mxu0 0.0
    %203 = vmatpush1.xpose.msra.mxu0 0.0
    %204 = vmatprep.subr.mxu0 0.0
    %205 = vmatpush1.xpose.msra.mxu0 0.0
    %206 = vmatprep.subr.mxu0 0.0
    %207 = vmatpush1.xpose.msra.mxu0 0.0
    %208 = vmatprep.subr.mxu0 0.0
    %209 = vmatpush1.xpose.msra.mxu0 0.0
    %210 = vmatprep.subr.mxu0 0.0
    %211 = vmatpush1.xpose.msra.mxu0 0.0
    %212 = vmatprep.subr.mxu0 0.0
    %213 = vmatpush1.xpose.msra.mxu0 0.0
    %214 = vmatprep.subr.mxu0 0.0
    %215 = vmatpush1.xpose.msra.mxu0 0.0
    %216 = vmatprep.subr.mxu0 0.0
    %217 = vmatpush1.xpose.msra.mxu0 0.0
    %218 = vmatprep.subr.mxu0 0.0
    %219 = vmatpush1.xpose.msra.mxu0 0.0
    %220 = vmatprep.subr.mxu0 0.0
    %221 = vmatpush1.xpose.msra.mxu0 0.0
    %222 = vmatprep.subr.mxu0 0.0
    %223 = vmatpush1.xpose.msra.mxu0 0.0
    %224 = vmatprep.subr.mxu0 0.0
    %225 = vmatpush1.xpose.msra.mxu0 0.0
    %226 = vmatprep.mubr.f32.mxu0 0.0
    %227 = vmatmul.mubr.f32.gmra.mrb[0].mxu0 %v148
    %v228 = vpop.f32.mrb[0].mxu0
    %v229 = vadd.f32 %v128, %v228
    %v230 = vpop.f32.mrb[0].mxu0
    %231 = vmatprep.mubr.f32.mxu0 0.0
    %232 = vmatmul.mubr.f32.gmra.mrb[0].mxu0 %v151
    %v233 = vpop.f32.mrb[0].mxu0
    %v234 = vadd.f32 %v133, %v233
    %v235 = vpop.f32.mrb[0].mxu0
    %236 = vmatprep.mubr.f32.mxu0 0.0
    %237 = vmatmul.mubr.f32.gmra.mrb[0].mxu0 %v154
    %v238 = vpop.f32.mrb[0].mxu0
    %v239 = vadd.f32 %v138, %v238
    %v240 = vpop.f32.mrb[0].mxu0
    %241 = vmatprep.mubr.f32.mxu0 0.0
    %242 = vmatmul.mubr.f32.gmra.mrb[0].mxu0 %v157
    %v243 = vpop.f32.mrb[0].mxu0
    %v244 = vadd.f32 %v143, %v243
    %v245 = vpop.f32.mrb[0].mxu0
    %246 = vdwg.mxu0
    %v247 = vld [vmem:[%s4] sm:$0xff]
    %v248 = vld [vmem:[%s4 + $0x8] sm:$0xff]
    %v249 = vld [vmem:[%s4 + $0x10] sm:$0xff]
    %v250 = vld [vmem:[%s4 + $0x18] sm:$0xff]
    %252 = vset.pattern.permute.xlu0 0
    %253 = vperm.xlu0 %252, %v247
    %v254 = vpop.permute.xlu0 %253
    %257 = vset.pattern.permute.xlu0 0
    %258 = vperm.xlu0 %257, %v248
    %v259 = vpop.permute.xlu0 %258
    %262 = vset.pattern.permute.xlu0 0
    %263 = vperm.xlu0 %262, %v249
    %v264 = vpop.permute.xlu0 %263
    %267 = vset.pattern.permute.xlu0 0
    %268 = vperm.xlu0 %267, %v250
    %v269 = vpop.permute.xlu0 %268
    %v271 = vadd.f32 %v229, %v254
    %v272 = vadd.f32 %v234, %v259
    %v273 = vadd.f32 %v239, %v264
    %v274 = vadd.f32 %v244, %v269
    %v275 = vtanh.pop %v271
    %v276 = vtanh.pop %v272
    %v277 = vtanh.pop %v273
    %v278 = vtanh.pop %v274
    %v279 = vld [vmem:[%s5] sm:$0xff]
    %v280 = vld [vmem:[%s5 + $0x8] sm:$0xff]
    %v281 = vld [vmem:[%s5 + $0x10] sm:$0xff]
    %v282 = vld [vmem:[%s5 + $0x18] sm:$0xff]
    %v283 = vld [vmem:[%s6] sm:$0xff]
    %v284 = vld [vmem:[%s6 + $0x8] sm:$0xff]
    %v285 = vld [vmem:[%s6 + $0x10] sm:$0xff]
    %v286 = vld [vmem:[%s6 + $0x18] sm:$0xff]
    %288 = vset.pattern.permute.xlu0 0
    %289 = vperm.xlu0 %288, %v283
    %v290 = vpop.permute.xlu0 %289
    %293 = vset.pattern.permute.xlu0 0
    %294 = vperm.xlu0 %293, %v284
    %v295 = vpop.permute.xlu0 %294
    %298 = vset.pattern.permute.xlu0 0
    %299 = vperm.xlu0 %298, %v285
    %v300 = vpop.permute.xlu0 %299
    %303 = vset.pattern.permute.xlu0 0
    %304 = vperm.xlu0 %303, %v286
    %v305 = vpop.permute.xlu0 %304
    %vm307 = vcmask 261120
    %v309 = vsel %vm307, %v279, 0
    %v312 = vsel %vm307, %v280, 0
    %v315 = vsel %vm307, %v281, 0
    %v318 = vsel %vm307, %v282, 0
    %320 = vmatprep.subr.mxu0 0.0
    %321 = vmatpush1.msra.mxu0 %v275
    %322 = vmatprep.subr.mxu0 0.0
    %323 = vmatpush1.msra.mxu0 %v276
    %324 = vmatprep.subr.mxu0 0.0
    %325 = vmatpush1.msra.mxu0 %v277
    %326 = vmatprep.subr.mxu0 0.0
    %327 = vmatpush1.msra.mxu0 %v278
    %328 = vmatprep.subr.mxu0 0.0
    %329 = vmatpush1.msra.mxu0 0.0
    %330 = vmatprep.subr.mxu0 0.0
    %331 = vmatpush1.msra.mxu0 0.0
    %332 = vmatprep.subr.mxu0 0.0
    %333 = vmatpush1.msra.mxu0 0.0
    %334 = vmatprep.subr.mxu0 0.0
    %335 = vmatpush1.msra.mxu0 0.0
    %336 = vmatprep.subr.mxu0 0.0
    %337 = vmatpush1.msra.mxu0 0.0
    %338 = vmatprep.subr.mxu0 0.0
    %339 = vmatpush1.msra.mxu0 0.0
    %340 = vmatprep.subr.mxu0 0.0
    %341 = vmatpush1.msra.mxu0 0.0
    %342 = vmatprep.subr.mxu0 0.0
    %343 = vmatpush1.msra.mxu0 0.0
    %344 = vmatprep.subr.mxu0 0.0
    %345 = vmatpush1.msra.mxu0 0.0
    %346 = vmatprep.subr.mxu0 0.0
    %347 = vmatpush1.msra.mxu0 0.0
    %348 = vmatprep.subr.mxu0 0.0
    %349 = vmatpush1.msra.mxu0 0.0
    %350 = vmatprep.subr.mxu0 0.0
    %351 = vmatpush1.msra.mxu0 0.0
    %352 = vmatprep.subr.mxu0 0.0
    %353 = vmatpush1.msra.mxu0 0.0
    %354 = vmatprep.subr.mxu0 0.0
    %355 = vmatpush1.msra.mxu0 0.0
    %356 = vmatprep.subr.mxu0 0.0
    %357 = vmatpush1.msra.mxu0 0.0
    %358 = vmatprep.subr.mxu0 0.0
    %359 = vmatpush1.msra.mxu0 0.0
    %360 = vmatprep.subr.mxu0 0.0
    %361 = vmatpush1.msra.mxu0 0.0
    %362 = vmatprep.subr.mxu0 0.0
    %363 = vmatpush1.msra.mxu0 0.0
    %364 = vmatprep.subr.mxu0 0.0
    %365 = vmatpush1.msra.mxu0 0.0
    %366 = vmatprep.subr.mxu0 0.0
    %367 = vmatpush1.msra.mxu0 0.0
    %368 = vmatprep.subr.mxu0 0.0
    %369 = vmatpush1.msra.mxu0 0.0
    %370 = vmatprep.subr.mxu0 0.0
    %371 = vmatpush1.msra.mxu0 0.0
    %372 = vmatprep.subr.mxu0 0.0
    %373 = vmatpush1.msra.mxu0 0.0
    %374 = vmatprep.subr.mxu0 0.0
    %375 = vmatpush1.msra.mxu0 0.0
    %376 = vmatprep.subr.mxu0 0.0
    %377 = vmatpush1.msra.mxu0 0.0
    %378 = vmatprep.subr.mxu0 0.0
    %379 = vmatpush1.msra.mxu0 0.0
    %380 = vmatprep.subr.mxu0 0.0
    %381 = vmatpush1.msra.mxu0 0.0
    %382 = vmatprep.subr.mxu0 0.0
    %383 = vmatpush1.msra.mxu0 0.0
    %384 = vmatprep.mubr.f32.mxu0 0.0
    %385 = vmatmul.mubr.f32.gmra.mrb[0].mxu0 %v309
    %v386 = vpop.f32.mrb[0].mxu0
    %v387 = vadd.f32 %v290, %v386
    %v388 = vpop.f32.mrb[0].mxu0
    %389 = vmatprep.mubr.f32.mxu0 0.0
    %390 = vmatmul.mubr.f32.gmra.mrb[0].mxu0 %v312
    %v391 = vpop.f32.mrb[0].mxu0
    %v392 = vadd.f32 %v295, %v391
    %v393 = vpop.f32.mrb[0].mxu0
    %394 = vmatprep.mubr.f32.mxu0 0.0
    %395 = vmatmul.mubr.f32.gmra.mrb[0].mxu0 %v315
    %v396 = vpop.f32.mrb[0].mxu0
    %v397 = vadd.f32 %v300, %v396
    %v398 = vpop.f32.mrb[0].mxu0
    %399 = vmatprep.mubr.f32.mxu0 0.0
    %400 = vmatmul.mubr.f32.gmra.mrb[0].mxu0 %v318
    %v401 = vpop.f32.mrb[0].mxu0
    %v402 = vadd.f32 %v305, %v401
    %v403 = vpop.f32.mrb[0].mxu0
    %404 = vdwg.mxu0
    %v405 = vtanh.pop %v387
    %v406 = vtanh.pop %v392
    %v407 = vtanh.pop %v397
    %v408 = vtanh.pop %v402
    %v409 = vld [vmem:[%s7] sm:$0xff]
    %v410 = vld [vmem:[%s7 + $0x8] sm:$0xff]
    %v411 = vld [vmem:[%s7 + $0x10] sm:$0xff]
    %v412 = vld [vmem:[%s7 + $0x18] sm:$0xff]
    %414 = vset.pattern.permute.xlu0 0
    %415 = vperm.xlu0 %414, %v409
    %v416 = vpop.permute.xlu0 %415
    %419 = vset.pattern.permute.xlu0 0
    %420 = vperm.xlu0 %419, %v410
    %v421 = vpop.permute.xlu0 %420
    %424 = vset.pattern.permute.xlu0 0
    %425 = vperm.xlu0 %424, %v411
    %v426 = vpop.permute.xlu0 %425
    %429 = vset.pattern.permute.xlu0 0
    %430 = vperm.xlu0 %429, %v412
    %v431 = vpop.permute.xlu0 %430
    %v433 = vmul.f32 %v405, %v416
    %v434 = vmul.f32 %v406, %v421
    %v435 = vmul.f32 %v407, %v426
    %v436 = vmul.f32 %v408, %v431
    %vm437 = vcmask 64512
    %v438 = vsel %vm437, %v433, 0.0
    %v439 = vsel %vm437, %v434, 0.0
    %v440 = vadd.f32 %v438, %v439
    %v441 = vsel %vm437, %v435, 0.0
    %v442 = vadd.f32 %v440, %v441
    %v443 = vsel %vm437, %v436, 0.0
    %v444 = vadd.f32 %v442, %v443
    %v445 = vrot.slane %v444, 4
    %v446 = vadd.f32 %v444, %v445
    %v447 = vrot.slane %v446, 2
    %v448 = vadd.f32 %v446, %v447
    %v449 = vrot.slane %v448, 1
    %v450 = vadd.f32 %v448, %v449
    %v451 = vld [vmem:[#allocation2] sm:$0x1]
    %453 = vset.pattern.permute.xlu0 0
    %454 = vperm.xlu0 %453, %v451
    %v455 = vpop.permute.xlu0 %454
    %v457 = vlaneseq
    %v458 = vshrl.u32 %v457, 7
    %v459 = vsub.s32 0, %v458
    %v460 = vrot.slane %v455, %v459
    %v461 = vadd.f32 %v450, %v460
    %vm462 = vcmask 57344
    %463 = vst.msk [vmem:[#allocation3] sm:$0x1] %vm462, %v461
    // Predicated region
    $region38: #{tpu_custom_call.1} parent=1 // pred_check
      _
    $region39: #{tpu_custom_call.1} parent=1 // pred_check_branch
      %465 = sbr.rel (0) target = $region41
    $region40: #{tpu_custom_call.1} parent=1 // pred_region
      %s467 = ssub.s32 16, 16
      %468 = vsyncadd [#allocation4], %s467
      %s470 = sshll.u32 [#allocation3], 4
      %s471 = int_to_ptr.vmem [resolvable:$true] %s470
      %473 = dma.vmem_to_hbm [thread:$0]  %s471, 16, %s9, [#allocation4]
    $region41: #{tpu_custom_call.1} parent=1 // pred_fallthru
      _
    // Predicated region
    $region42: #{tpu_custom_call.1} parent=1 // pred_check
      _
    $region43: #{tpu_custom_call.1} parent=1 // pred_check_branch
      %475 = sbr.rel (0) target = $region45
    $region44: #{tpu_custom_call.1} parent=1 // pred_region
      %476 = dma.done [#allocation4], 16
    $region45: #{tpu_custom_call.1} parent=1 // pred_fallthru
      _
    %477 = vsyncpa [#allocation4], 1

</llo_original>
